<compile_context>
chip_gen: v7x
topology: tpu7x:2x2x1
jax: 0.10.0
libtpu: 0.0.40
codegen_flags: <defaults>
</compile_context>

<pallas_src>
import math

import jax
import jax.numpy as jnp
from jax.experimental import pallas as pl
from jax.experimental.pallas import tpu as pltpu


def _broadcast_kernel(idx_ref, slot_ref, glob_ref, out_ref):
    """One row-tile of the broadcast.

    idx_ref  : (TR, G) int32    batch index of each of the G points packed per row
    slot_ref : (G, W)  float32  precomputed lane->slot one-hot map, W = G*C
    glob_ref : (B, W)  out dtype; row b = feats_glob[b] tiled G times along lanes
    out_ref  : (TR, W) out dtype
    """
    tr = idx_ref.shape[0]
    b, w = glob_ref.shape

    # Start from batch 0 (padded rows / out-of-range indices land here too).
    out = jnp.broadcast_to(glob_ref[0:1, :], (tr, w))

    if b > 1:
        # lane_idx[r, l] = idx[r, l // C], realized as a tiny-K MXU matmul with
        # the precomputed slot map: zero VALU/XLU cost for the lane expansion.
        # Values are small integers, so the f32 matmul and == compare are exact.
        lane_idx = jnp.dot(idx_ref[...].astype(jnp.float32), slot_ref[...],
                           preferred_element_type=jnp.float32)
        # Unrolled per-batch select gather: 2*(B-1) VALU ops per output vreg.
        for bb in range(1, b):
            out = jnp.where(lane_idx == jnp.float32(bb),
                            glob_ref[bb:bb + 1, :], out)

    out_ref[...] = out.astype(out_ref.dtype)


def _round_up(x, m):
    return ((x + m - 1) // m) * m


def _vmem_bytes_estimate(tile_r, g, w, bsz, itemsize):
    """Rough per-step live VMEM: double-buffered blocks + elementwise temps."""
    idx_b = 2 * tile_r * _round_up(g, 128) * 4            # lane-padded int32 idx
    out_b = 2 * tile_r * w * itemsize                      # double-buffered output
    glob_b = 2 * _round_up(bsz, 8) * w * itemsize          # resident tiled glob
    slot_b = 2 * _round_up(g, 8) * w * 4                   # resident slot map
    temp_b = 3 * tile_r * w * 4                            # lane_idx + select temps
    return idx_b + out_b + glob_b + slot_b + temp_b


def minkowski_broadcast(feats_in, batch_idx, feats_glob, *, target_tile_bytes=2 << 20):
    """MinkowskiBroadcast forward.

    feats_in   : (N, C)  input sparse-tensor features (defines output rows only)
    batch_idx  : (N,)    int batch index per input point (first coord column)
    feats_glob : (B, C)  globally reduced features (one row per batch)
    returns    : (N, C)  feats_glob[batch_idx[i]] per row
    """
    n, c = feats_in.shape
    bsz, c2 = feats_glob.shape
    assert c == c2, "input and global feature channel counts must match"
    out_dtype = feats_glob.dtype
    itemsize = jnp.dtype(out_dtype).itemsize

    # Lane-dense packing: pack G consecutive points per kernel row so the minor
    # (lane) dim of the output block is lcm(C, 128) -> always a multiple of 128
    # (unmasked full-lane stores).  G is a power-of-two divisor of 128.
    g = 128 // math.gcd(c, 128)
    w = g * c
    if w * itemsize > (64 << 10):          # awkward channel counts: fall back
        g, w = 1, c

    row_bytes = w * itemsize
    r_needed = -(-n // g)                  # ceil(n / g) packed rows

    # Row tile: ~target_tile_bytes of output per grid step ...
    tile_r = max(8, (target_tile_bytes // row_bytes) // 8 * 8)
    # ... never overshoot the (row-padded) problem ...
    tile_r = min(tile_r, _round_up(r_needed, 8))
    # ... keep >= 2 grid steps when possible so both v7x TensorCores get work ...
    if r_needed > 8:
        tile_r = min(tile_r, max(8, _round_up(-(-r_needed // 2), 8)))
    # ... and shrink if the VMEM budget would exceed ~24 MiB (v7x headroom).
    while tile_r > 8 and _vmem_bytes_estimate(tile_r, g, w, bsz, itemsize) > (24 << 20):
        tile_r = max(8, _round_up(tile_r // 2, 8))

    r_pad = _round_up(r_needed, tile_r)
    n_pad = r_pad * g
    grid = (r_pad // tile_r,)

    # Batch index per point, packed G per row.  Padded rows get batch 0 (their
    # output is computed, written, then sliced off below).
    idx = batch_idx.astype(jnp.int32).reshape(n)
    if n_pad != n:
        idx = jnp.pad(idx, (0, n_pad - n))
    idx2 = idx.reshape(r_pad, g)

    # One row per batch, replicated G times along lanes to match the packing.
    glob_tiled = jnp.tile(feats_glob, (1, g)) if g > 1 else feats_glob      # (B, W)

    # Precomputed lane -> slot one-hot map: slot_expand[j, l] = 1 iff l // C == j.
    slot_expand = jnp.repeat(jnp.eye(g, dtype=jnp.float32), c, axis=1)      # (G, W)

    vmem_limit = _vmem_bytes_estimate(tile_r, g, w, bsz, itemsize)
    vmem_limit = min(max(int(vmem_limit * 1.25) + (2 << 20), 8 << 20), 32 << 20)

    out2 = pl.pallas_call(
        _broadcast_kernel,
        out_shape=jax.ShapeDtypeStruct((r_pad, w), out_dtype),
        grid=grid,
        in_specs=[
            pl.BlockSpec((tile_r, g), lambda i: (i, 0)),     # packed batch indices
            pl.BlockSpec((g, w), lambda i: (0, 0)),          # resident slot map
            pl.BlockSpec((bsz, w), lambda i: (0, 0)),        # resident global feats
        ],
        out_specs=pl.BlockSpec((tile_r, w), lambda i: (i, 0)),
        compiler_params=pltpu.CompilerParams(
            dimension_semantics=("parallel",),
            vmem_limit_bytes=vmem_limit,
        ),
    )(idx2, slot_expand, glob_tiled)

    # Undo the lane-dense packing (pure row-major reshape) and drop padding.
    return out2.reshape(n_pad, c)[:n]


if __name__ == "__main__":
    key = jax.random.PRNGKey(0)
    k1, k2, k3 = jax.random.split(key, 3)

    # Small deterministic example: N points across B batches, C channels.
    N, B, C = 64, 2, 32
    dimension = 3  # spatial dimension of the sparse tensor (coords unused for values)

    feats_in = jax.random.normal(k1, (N, C), dtype=jnp.float32)
    feats_glob = jax.random.normal(k2, (B, C), dtype=jnp.float32)
    # Batch index per point (first column of the sparse coordinates).
    batch_idx = jax.random.randint(k3, (N,), 0, B, dtype=jnp.int32)

    out = minkowski_broadcast(feats_in, batch_idx, feats_glob)
    out = jax.block_until_ready(out)

    # Reference: out[i] = feats_glob[batch_idx[i]]  (== perm_mat @ feats_glob)
    ref = jnp.take(feats_glob, batch_idx, axis=0)
    assert out.shape == (N, C)
    assert jnp.allclose(out, ref, atol=1e-6), "mismatch vs reference broadcast"

    print("KERNEL_OK")
</pallas_src>

<mosaic_0001>
module attributes {stable_mosaic.version = 11 : i64} {
  func.func @_broadcast_kernel(%arg0: i32, %arg1: memref<8x4xi32, #tpu.memory_space<vmem>>, %arg2: memref<4x128xf32, #tpu.memory_space<vmem>>, %arg3: memref<2x128xf32, #tpu.memory_space<vmem>>, %arg4: memref<8x128xf32, #tpu.memory_space<vmem>>) attributes {dimension_semantics = [#tpu.dimension_semantics<parallel>], iteration_bounds = array<i64: 2>, scalar_prefetch = 0 : i64, scratch_operands = 0 : i64, tpu.core_type = #tpu.core_type<tc>, window_params = [{transform_indices = @transform_0, window_bounds = array<i64: 8, 4>}, {pipeline_mode = #tpu.pipeline_mode<synchronous>, transform_indices = @transform_1, window_bounds = array<i64: 4, 128>}, {pipeline_mode = #tpu.pipeline_mode<synchronous>, transform_indices = @transform_2, window_bounds = array<i64: 2, 128>}, {transform_indices = @transform_3, window_bounds = array<i64: 8, 128>}]} {
    %c0 = arith.constant 0 : index
    %c0_0 = arith.constant 0 : index
    %0 = vector.load %arg3[%c0, %c0_0] : memref<2x128xf32, #tpu.memory_space<vmem>>, vector<1x128xf32>
    %1 = vector.shape_cast %0 : vector<1x128xf32> to vector<1x128xf32>
    %2 = vector.broadcast %1 : vector<1x128xf32> to vector<8x128xf32>
    %c0_1 = arith.constant 0 : index
    %c0_2 = arith.constant 0 : index
    %3 = vector.load %arg1[%c0_1, %c0_2] : memref<8x4xi32, #tpu.memory_space<vmem>>, vector<8x4xi32>
    %4 = arith.sitofp %3 : vector<8x4xi32> to vector<8x4xf32>
    %c0_3 = arith.constant 0 : index
    %c0_4 = arith.constant 0 : index
    %5 = vector.load %arg2[%c0_3, %c0_4] : memref<4x128xf32, #tpu.memory_space<vmem>>, vector<4x128xf32>
    %cst = arith.constant dense<0.000000e+00> : vector<8x128xf32>
    %6 = tpu.matmul %4, %5, %cst {dimension_numbers = #tpu.dot_dimension_numbers<[1], [0], [0], [1], [0, 0, 1, 1], [], []>} : vector<8x4xf32>, vector<4x128xf32>, vector<8x128xf32> -> vector<8x128xf32>
    %cst_5 = arith.constant 1.000000e+00 : f32
    %7 = vector.broadcast %cst_5 : f32 to vector<8x128xf32>
    %8 = arith.cmpf oeq, %6, %7 : vector<8x128xf32>
    %c1 = arith.constant 1 : index
    %c0_6 = arith.constant 0 : index
    %9 = vector.load %arg3[%c1, %c0_6] : memref<2x128xf32, #tpu.memory_space<vmem>>, vector<1x128xf32>
    %10 = vector.shape_cast %9 : vector<1x128xf32> to vector<1x128xf32>
    %11 = vector.broadcast %10 : vector<1x128xf32> to vector<8x128xf32>
    %12 = arith.select %8, %11, %2 : vector<8x128xi1>, vector<8x128xf32>
    %c0_7 = arith.constant 0 : index
    %c0_8 = arith.constant 0 : index
    %13 = vector.load %arg4[%c0_7, %c0_8] : memref<8x128xf32, #tpu.memory_space<vmem>>, vector<8x128xf32>
    tpu.vector_store %arg4[%c0_7, %c0_8], %12 {strides = array<i32>} : memref<8x128xf32, #tpu.memory_space<vmem>>, vector<8x128xf32>,
    return
  }
  func.func @transform_0(%arg0: i32) -> (i32, i32) {
    %c0_i32 = arith.constant 0 : i32
    %c0_i32_0 = arith.constant 0 : i32
    return %arg0, %c0_i32 : i32, i32
  }
  func.func @transform_1(%arg0: i32) -> (i32, i32) {
    %c0_i32 = arith.constant 0 : i32
    %c0_i32_0 = arith.constant 0 : i32
    %c0_i32_1 = arith.constant 0 : i32
    return %c0_i32, %c0_i32_0 : i32, i32
  }
  func.func @transform_2(%arg0: i32) -> (i32, i32) {
    %c0_i32 = arith.constant 0 : i32
    %c0_i32_0 = arith.constant 0 : i32
    %c0_i32_1 = arith.constant 0 : i32
    return %c0_i32, %c0_i32_0 : i32, i32
  }
  func.func @transform_3(%arg0: i32) -> (i32, i32) {
    %c0_i32 = arith.constant 0 : i32
    %c0_i32_0 = arith.constant 0 : i32
    return %arg0, %c0_i32 : i32, i32
  }
}

</mosaic_0001>

<llo_original>
// kernel: tpu_custom_call.1
$region0: #{tpu_custom_call.1}
  #allocation0 [shape = 'u32[]', space=smem, size = 0x4, offset = 0x4, fixed_abs, tag = 'smem constant byte address 0x4 - core index']
  #allocation1 [shape = 'u32[144,128]{1,0:T(1,128)}', space=vmem, size = 0x12000, scoped, tag = 'internal scratch']
  %s0 = inlined_call_operand.vmem [shape: s32[16,4], index: 0, kind: input, shape index: {}]
  %s1 = inlined_call_operand.vmem [shape: f32[4,128], index: 1, kind: input, shape index: {}]
  %s2 = inlined_call_operand.vmem [shape: f32[2,128], index: 2, kind: input, shape index: {}]
  %s3 = inlined_call_operand.hbm [shape: f32[16,128], index: 3, kind: output, shape index: {}]
  %s4 = sld [smem:[#allocation0]]
  $region45: #{tpu_custom_call.1} parent=0
    _
  %s6 = ssub.s32 1, %s4
  %s7 = scalar_select 0, %s6, %s4
  $region1: #{tpu_custom_call.1} parent=0
    #allocation2 [shape = 'u8[8192]{0}', space=vmem, size = 0x2000, scoped, tag = 'output window, operand 0']
    #allocation3 [shape = 's32[2]{0}', space=sflag, size = 0x8, scoped, tag = 'scoped memory for tpu_custom_call.1']
    %8 = vsyncpa [#allocation3], 0
    %s9 = scalar_lea.sflag [#allocation3], 1
    %10 = vsyncpa %s9, 0
    loop: start=0, step=1, limit=4
    $region2: #{tpu_custom_call.1} parent=1 // loop_pre_header
      _
    $region3: #{tpu_custom_call.1} parent=1 // loop_header
      %s12 = sphi 0, %s16
      %p13 = scmp.ge.s32.totalorder %s12, 4
      %s22 = sphi 0, %s24
      %s25 = sphi 0, %s22
      %s26 = sphi 0, %s25
      %s42 = sphi 0, %s26
      %s46 = sphi 0, %s46
      %s48 = sphi 0, %s46
      %s49 = sphi 0, %s48
      %s63 = sphi 0, %s49
      %s67 = sphi 0, %s67
      %s69 = sphi 0, %s67
      %s70 = sphi 0, %s69
      %s84 = sphi 0, %s70
      %s90 = sphi 0, %s92
      %s93 = sphi 0, %s90
      %s94 = sphi 0, %s93
      %s110 = sphi 0, %s94
    $region4: #{tpu_custom_call.1} parent=1 // loop_header_branch
      %15 = sbr.rel (%p13) target = $region8
    $region5: #{tpu_custom_call.1} parent=1 // loop_body
      %s17 = ssub.s32 %s12, 1
      %s18 = ssub.s32 %s12, 2
      %s19 = sadd.s32 %s12, 1
      %s20 = ssub.s32 %s12, %s19
      %p21 = scmp.eq.s32.totalorder %s20, 0
      %s23 = sadd.s32 %s22, 1
      %s24 = scalar_select %p21, %s22, %s23
      %p27 = pneg %p21
      %p28 = scmp.eq.s32.totalorder %s12, 1
      %p29 = por %p27, %p28
      %p30 = scmp.ne.s32.totalorder %s22, %s25
      %p31 = scmp.eq.s32.totalorder %s12, 0
      %p32 = por %p30, %p31
      %p33 = scmp.ne.s32.totalorder %s22, %s25
      %p34 = scmp.eq.s32.totalorder %s17, 1
      %p35 = por %p33, %p34
      %p36 = scmp.ne.s32.totalorder %s25, %s26
      %p37 = scmp.eq.s32.totalorder %s17, 0
      %p38 = por %p36, %p37
      %p39 = scmp.ne.s32.totalorder %s25, %s26
      %p40 = scmp.eq.s32.totalorder %s18, 1
      %p41 = por %p39, %p40
      %p43 = scmp.ne.s32.totalorder %s26, %s42
      %p44 = scmp.eq.s32.totalorder %s18, 0
      %p45 = por %p43, %p44
      %s47 = sadd.s32 %s46, 1
      %p50 = scmp.eq.s32.totalorder %s12, 1
      %p51 = scmp.ne.s32.totalorder %s46, %s48
      %p52 = scmp.eq.s32.totalorder %s12, 0
      %p53 = por %p51, %p52
      %p54 = scmp.ne.s32.totalorder %s46, %s48
      %p55 = scmp.eq.s32.totalorder %s17, 1
      %p56 = por %p54, %p55
      %p57 = scmp.ne.s32.totalorder %s48, %s49
      %p58 = scmp.eq.s32.totalorder %s17, 0
      %p59 = por %p57, %p58
      %p60 = scmp.ne.s32.totalorder %s48, %s49
      %p61 = scmp.eq.s32.totalorder %s18, 1
      %p62 = por %p60, %p61
      %p64 = scmp.ne.s32.totalorder %s49, %s63
      %p65 = scmp.eq.s32.totalorder %s18, 0
      %p66 = por %p64, %p65
      %s68 = sadd.s32 %s67, 1
      %p71 = scmp.eq.s32.totalorder %s12, 1
      %p72 = scmp.ne.s32.totalorder %s67, %s69
      %p73 = scmp.eq.s32.totalorder %s12, 0
      %p74 = por %p72, %p73
      %p75 = scmp.ne.s32.totalorder %s67, %s69
      %p76 = scmp.eq.s32.totalorder %s17, 1
      %p77 = por %p75, %p76
      %p78 = scmp.ne.s32.totalorder %s69, %s70
      %p79 = scmp.eq.s32.totalorder %s17, 0
      %p80 = por %p78, %p79
      %p81 = scmp.ne.s32.totalorder %s69, %s70
      %p82 = scmp.eq.s32.totalorder %s18, 1
      %p83 = por %p81, %p82
      %p85 = scmp.ne.s32.totalorder %s70, %s84
      %p86 = scmp.eq.s32.totalorder %s18, 0
      %p87 = por %p85, %p86
      %s88 = ssub.s32 %s12, %s19
      %p89 = scmp.eq.s32.totalorder %s88, 0
      %s91 = sadd.s32 %s90, 1
      %s92 = scalar_select %p89, %s90, %s91
      %p95 = pneg %p89
      %p96 = scmp.eq.s32.totalorder %s12, 1
      %p97 = por %p95, %p96
      %p98 = scmp.ne.s32.totalorder %s90, %s93
      %p99 = scmp.eq.s32.totalorder %s12, 0
      %p100 = por %p98, %p99
      %p101 = scmp.ne.s32.totalorder %s90, %s93
      %p102 = scmp.eq.s32.totalorder %s17, 1
      %p103 = por %p101, %p102
      %p104 = scmp.ne.s32.totalorder %s93, %s94
      %p105 = scmp.eq.s32.totalorder %s17, 0
      %p106 = por %p104, %p105
      %p107 = scmp.ne.s32.totalorder %s93, %s94
      %p108 = scmp.eq.s32.totalorder %s18, 1
      %p109 = por %p107, %p108
      %p111 = scmp.ne.s32.totalorder %s94, %s110
      %p112 = scmp.eq.s32.totalorder %s18, 0
      %p113 = por %p111, %p112
      %p114 = scmp.le.s32.totalorder 1, %s12
      %p115 = scmp.lt.s32.totalorder %s12, 3
      %p116 = pnand %p114, %p115
      %p117 = pneg %p116
      // Predicated region
      $region9: #{tpu_custom_call.1} parent=5 // pred_check
        _
      $region10: #{tpu_custom_call.1} parent=5 // pred_check_branch
        %119 = sbr.rel (%p116) target = $region12
      $region11: #{tpu_custom_call.1} parent=5 // pred_region
        %s120 = ssub.s32 %s12, 1
        // Predicated region
        $region13: #{tpu_custom_call.1} parent=11 // pred_check
          %p121 = pneg %p59
        $region14: #{tpu_custom_call.1} parent=11 // pred_check_branch
          %123 = sbr.rel (%p121) target = $region16
        $region15: #{tpu_custom_call.1} parent=11 // pred_region
          _
        $region16: #{tpu_custom_call.1} parent=11 // pred_fallthru
          _
        // Predicated region
        $region17: #{tpu_custom_call.1} parent=11 // pred_check
          %p124 = pneg %p80
        $region18: #{tpu_custom_call.1} parent=11 // pred_check_branch
          %126 = sbr.rel (%p124) target = $region20
        $region19: #{tpu_custom_call.1} parent=11 // pred_region
          _
        $region20: #{tpu_custom_call.1} parent=11 // pred_fallthru
          _
      $region12: #{tpu_custom_call.1} parent=5 // pred_fallthru
        _
      %p127 = scmp.lt.s32.totalorder %s12, 2
      // Predicated region
      $region21: #{tpu_custom_call.1} parent=5 // pred_check
        %p128 = pneg %p127
      $region22: #{tpu_custom_call.1} parent=5 // pred_check_branch
        %130 = sbr.rel (%p128) target = $region24
      $region23: #{tpu_custom_call.1} parent=5 // pred_region
        // Predicated region
        $region25: #{tpu_custom_call.1} parent=23 // pred_check
          %p131 = pneg %p32
        $region26: #{tpu_custom_call.1} parent=23 // pred_check_branch
          %133 = sbr.rel (%p131) target = $region28
        $region27: #{tpu_custom_call.1} parent=23 // pred_region
          %p134 = scmp.lt.s32.totalorder %s12, 1
          %s135 = scalar_select %p134, %s12, 1
          %s136 = smul.addr %s135, 8
          %s137 = scalar_lea.vmem %s0, %s136
        $region28: #{tpu_custom_call.1} parent=23 // pred_fallthru
          _
      $region24: #{tpu_custom_call.1} parent=5 // pred_fallthru
        _
      %p138 = scmp.le.s32.totalorder 1, %s12
      %p139 = scmp.lt.s32.totalorder %s12, 3
      %p140 = pnand %p138, %p139
      %p141 = pneg %p140
      // Predicated region
      $region29: #{tpu_custom_call.1} parent=5 // pred_check
        _
      $region30: #{tpu_custom_call.1} parent=5 // pred_check_branch
        %143 = sbr.rel (%p140) target = $region32
      $region31: #{tpu_custom_call.1} parent=5 // pred_region
        %s144 = ssub.s32 %s12, 1
        %p145 = scmp.lt.s32.totalorder %s17, 1
        %s146 = scalar_select %p145, %s17, 1
        %s147 = smul.addr %s146, 8
        %s148 = scalar_lea.vmem %s0, %s147
        %p149 = pneg %p38
        %p150 = pneg %p35
        %p151 = pneg %p59
        %p152 = pneg %p56
        %p153 = pneg %p80
        %p154 = pneg %p77
        %p155 = pneg %p106
        %p156 = pneg %p103
        %s157 = sand.u32 %s93, 1
        %s158 = scalar_lea.sflag [#allocation3], %s157
        %s159 = sand.u32 %s93, 1
        %s160 = smul.addr %s159, 8
        %s161 = scalar_lea.vmem [#allocation2], %s160
        %p162 = scmp.lt.s32.totalorder %s17, 1
        %s163 = scalar_select %p162, %s17, 1
        %s164 = smul.addr %s163, 8
        %s165 = scalar_lea.vmem %s0, %s164
        %v166 = vld [vmem:[%s2] sm:$0x1]
        %v167 = vlaneseq
        %v168 = vshrl.u32 %v167, 7
        %v169 = vsub.s32 0, %v168
        %v170 = vrot.slane %v166, %v169
        %v171 = vld [vmem:[%s165] sm:$0xff]
        %v172 = vcvt.s32.f32 %v171
        %v173 = vld [vmem:[%s1] sm:$0xf]
        %vm174 = vcmask 31744
        %v176 = vsel %vm174, %v172, 0
        %vm178 = vcmask 1043456
        %v180 = vsel %vm178, %v173, 0
        %182 = vmatprep.subr.mxu0 0.0
        %183 = vmatpush1.msra.mxu0 %v180
        %184 = vmatprep.subr.mxu0 0.0
        %185 = vmatpush1.msra.mxu0 0.0
        %186 = vmatprep.subr.mxu0 0.0
        %187 = vmatpush1.msra.mxu0 0.0
        %188 = vmatprep.subr.mxu0 0.0
        %189 = vmatpush1.msra.mxu0 0.0
        %190 = vmatprep.subr.mxu0 0.0
        %191 = vmatpush1.msra.mxu0 0.0
        %192 = vmatprep.subr.mxu0 0.0
        %193 = vmatpush1.msra.mxu0 0.0
        %194 = vmatprep.subr.mxu0 0.0
        %195 = vmatpush1.msra.mxu0 0.0
        %196 = vmatprep.subr.mxu0 0.0
        %197 = vmatpush1.msra.mxu0 0.0
        %198 = vmatprep.subr.mxu0 0.0
        %199 = vmatpush1.msra.mxu0 0.0
        %200 = vmatprep.subr.mxu0 0.0
        %201 = vmatpush1.msra.mxu0 0.0
        %202 = vmatprep.subr.mxu0 0.0
        %203 = vmatpush1.msra.mxu0 0.0
        %204 = vmatprep.subr.mxu0 0.0
        %205 = vmatpush1.msra.mxu0 0.0
        %206 = vmatprep.subr.mxu0 0.0
        %207 = vmatpush1.msra.mxu0 0.0
        %208 = vmatprep.subr.mxu0 0.0
        %209 = vmatpush1.msra.mxu0 0.0
        %210 = vmatprep.subr.mxu0 0.0
        %211 = vmatpush1.msra.mxu0 0.0
        %212 = vmatprep.subr.mxu0 0.0
        %213 = vmatpush1.msra.mxu0 0.0
        %214 = vmatprep.subr.mxu0 0.0
        %215 = vmatpush1.msra.mxu0 0.0
        %216 = vmatprep.subr.mxu0 0.0
        %217 = vmatpush1.msra.mxu0 0.0
        %218 = vmatprep.subr.mxu0 0.0
        %219 = vmatpush1.msra.mxu0 0.0
        %220 = vmatprep.subr.mxu0 0.0
        %221 = vmatpush1.msra.mxu0 0.0
        %222 = vmatprep.subr.mxu0 0.0
        %223 = vmatpush1.msra.mxu0 0.0
        %224 = vmatprep.subr.mxu0 0.0
        %225 = vmatpush1.msra.mxu0 0.0
        %226 = vmatprep.subr.mxu0 0.0
        %227 = vmatpush1.msra.mxu0 0.0
        %228 = vmatprep.subr.mxu0 0.0
        %229 = vmatpush1.msra.mxu0 0.0
        %230 = vmatprep.subr.mxu0 0.0
        %231 = vmatpush1.msra.mxu0 0.0
        %232 = vmatprep.subr.mxu0 0.0
        %233 = vmatpush1.msra.mxu0 0.0
        %234 = vmatprep.subr.mxu0 0.0
        %235 = vmatpush1.msra.mxu0 0.0
        %236 = vmatprep.subr.mxu0 0.0
        %237 = vmatpush1.msra.mxu0 0.0
        %238 = vmatprep.subr.mxu0 0.0
        %239 = vmatpush1.msra.mxu0 0.0
        %240 = vmatprep.subr.mxu0 0.0
        %241 = vmatpush1.msra.mxu0 0.0
        %242 = vmatprep.subr.mxu0 0.0
        %243 = vmatpush1.msra.mxu0 0.0
        %244 = vmatprep.subr.mxu0 0.0
        %245 = vmatpush1.msra.mxu0 0.0
        %246 = vmatprep.mubr.f32.mxu0 0.0
        %247 = vmatmul.mubr.f32.gmra.mrb[0].mxu0 %v176
        %v248 = vpop.f32.mrb[0].mxu0
        %v249 = vadd.f32 0.0, %v248
        %v250 = vpop.f32.mrb[0].mxu0
        %251 = vdwg.mxu0
        %vm252 = vcmp.eq.f32.partialorder %v249, 1.0
        %v253 = vld [vmem:[%s2 + $0x1] sm:$0x1]
        %v254 = vlaneseq
        %v255 = vshrl.u32 %v254, 7
        %v256 = vsub.s32 0, %v255
        %v257 = vrot.slane %v253, %v256
        %v258 = vsel %vm252, %v257, %v170
        %259 = vst [vmem:[%s161] sm:$0xff] %v258
        %s260 = sand.u32 %s93, 1
        %s261 = scalar_lea.sflag [#allocation3], %s260
        %s262 = sand.u32 %s93, 1
        %s263 = smul.addr %s262, 8
        %s264 = scalar_lea.vmem [#allocation2], %s263
        // Predicated region
        $region33: #{tpu_custom_call.1} parent=31 // pred_check
          %p265 = pneg %p103
        $region34: #{tpu_custom_call.1} parent=31 // pred_check_branch
          %267 = sbr.rel (%p265) target = $region36
        $region35: #{tpu_custom_call.1} parent=31 // pred_region
          %s269 = ssub.s32 128, 128
          %270 = vsyncadd %s261, %s269
          %s271 = smul.addr %s17, 128
          %s272 = scalar_lea.hbm %s3, %s271
          %s274 = sshll.u32 %s264, 4
          %s275 = int_to_ptr.vmem [resolvable:$true] %s274
          %277 = dma.vmem_to_hbm [thread:$0]  %s275, 128, %s272, %s261
        $region36: #{tpu_custom_call.1} parent=31 // pred_fallthru
          _
      $region32: #{tpu_custom_call.1} parent=5 // pred_fallthru
        _
      %p278 = scmp.le.s32.totalorder 2, %s12
      // Predicated region
      $region37: #{tpu_custom_call.1} parent=5 // pred_check
        %p279 = pneg %p278
      $region38: #{tpu_custom_call.1} parent=5 // pred_check_branch
        %281 = sbr.rel (%p279) target = $region40
      $region39: #{tpu_custom_call.1} parent=5 // pred_region
        %s282 = ssub.s32 %s12, 2
        // Predicated region
        $region41: #{tpu_custom_call.1} parent=39 // pred_check
          %p283 = pneg %p109
        $region42: #{tpu_custom_call.1} parent=39 // pred_check_branch
          %285 = sbr.rel (%p283) target = $region44
        $region43: #{tpu_custom_call.1} parent=39 // pred_region
          %s286 = sand.u32 %s94, 1
          %s287 = scalar_lea.sflag [#allocation3], %s286
          %s288 = sand.u32 %s94, 1
          %s289 = smul.addr %s288, 8
          %s290 = scalar_lea.vmem [#allocation2], %s289
          %291 = dma.done %s287, 128
        $region44: #{tpu_custom_call.1} parent=39 // pred_fallthru
          _
      $region40: #{tpu_custom_call.1} parent=5 // pred_fallthru
        _
    $region6: #{tpu_custom_call.1} parent=1 // loop_footer
      %s16 = sadd.s32 1, %s12
    $region7: #{tpu_custom_call.1} parent=1 // loop_footer_branch
      %11 = sbr.rel target = $region3
    $region8: #{tpu_custom_call.1} parent=1 // loop_exit
      _
    %292 = vsyncpa [#allocation3], 1
    %s293 = scalar_lea.sflag [#allocation3], 1
    %294 = vsyncpa %s293, 1

</llo_original>
